<compile_context>
chip_gen: v7x
topology: tpu7x:2x2x1
jax: 0.10.0
libtpu: 0.0.40
codegen_flags: <defaults>
</compile_context>

<pallas_src>
import jax
import jax.numpy as jnp
import numpy as np
from jax.experimental import pallas as pl
from jax.experimental.pallas import tpu as pltpu

FEATS_DIM = 1       # from the module: feats_dim = 1
HIDDEN = 128        # nn.Linear(feats_dim, 128)
OUTPUT_DIM = 3      # dipole vector (x, y, z); .squeeze(-1) is a no-op for dim != 1

LANES = 128
SUBLANES = 8
ROW_BLOCK_MAX = 512              # rows of one graph per x block (512*128*2 B = 128 KiB)
X_BLOCK_TARGET_BYTES = 1 << 20   # ~1 MiB x tiles (mem-bound sweet spot, ~85% roofline)
MAX_GRAPHS_PER_BLOCK = 1024
X_DTYPE = jnp.bfloat16           # halve HBM traffic on the bandwidth-bound x stream


def _round_up(v, m):
    return ((v + m - 1) // m) * m


def _pick_graph_block(b_padded, row_block):
    """Graphs per grid block: large enough for ~1 MiB x tiles, small enough that the
    'parallel' graph axis spans >= 2 blocks (v7x megacore) when the batch allows."""
    bytes_per_graph = row_block * LANES * 2            # bf16 x slab per row block
    g = max(SUBLANES,
            (X_BLOCK_TARGET_BYTES // max(bytes_per_graph, 1)) // SUBLANES * SUBLANES)
    g = min(g, MAX_GRAPHS_PER_BLOCK)
    if b_padded >= 2 * SUBLANES:                       # leave >= 2 graph blocks
        g = min(g, (b_padded // 2) // SUBLANES * SUBLANES)
    g = min(g, b_padded)
    g = max(g, SUBLANES)
    while b_padded % g:                                # b_padded is a multiple of 8
        g -= SUBLANES
    return g


def _dipole_head_kernel(x_ref,        # VMEM (G, row_block, 128) bf16 node features
                        inv_ref,      # VMEM (G, 128) f32, 1/max(n_g,1) on every lane
                        w1_ref,       # VMEM (1, 128) f32
                        b1_ref,       # VMEM (1, 128) f32
                        w2_ref,       # VMEM (128, 128) f32 (cols >= OUTPUT_DIM zero)
                        b2_ref,       # VMEM (1, 128) f32 (lanes >= OUTPUT_DIM zero)
                        o_ref,        # VMEM (G, 128) f32 lane-dense output
                        acc_ref):     # VMEM scratch (G, 128) f32
    rb = pl.program_id(1)

    @pl.when(rb == 0)
    def _():
        acc_ref[...] = jnp.zeros_like(acc_ref)

    # Per-graph, per-lane partial sums of node features for this row block.
    acc_ref[...] += jnp.sum(x_ref[...].astype(jnp.float32), axis=1)     # (G, 128)

    @pl.when(rb == pl.num_programs(1) - 1)
    def _():
        # torch.mean(x, dim=0): padded slots are zero; 1/max(n,1) precomputed host-side.
        mean = jnp.sum(acc_ref[...] * inv_ref[...], axis=-1, keepdims=True)   # (G, 1)
        # Linear(1, 128) + ReLU == relu(mean * w1_row + b1): pure VPU broadcast.
        h = jnp.maximum(mean * w1_ref[...] + b1_ref[...], 0.0)                # (G, 128)
        # Linear(128, OUTPUT_DIM) zero-padded to 128 lanes: one MXU matmul and a
        # full-width unmasked store (lane-dense output).
        o_ref[...] = jnp.dot(h, w2_ref[...],
                             preferred_element_type=jnp.float32) + b2_ref[...]


def make_dipole_head(w1, b1, w2, b2, *, max_nodes, x_dtype=X_DTYPE):
    """Pre-pads / pre-transposes the regression-head weights ONCE (init time) and
    returns (pack_graphs, forward_batched). Only x / inv_counts change per call."""
    assert w1.shape == (FEATS_DIM, HIDDEN) and w2.shape == (HIDDEN, OUTPUT_DIM)
    assert b1.shape == (HIDDEN,) and b2.shape == (OUTPUT_DIM,)

    # feats_dim == 1 -> first Linear only ever sees row 0 of w1.
    w1_row = jnp.asarray(w1, jnp.float32).reshape(1, HIDDEN)
    b1_row = jnp.asarray(b1, jnp.float32).reshape(1, HIDDEN)
    # Second Linear zero-padded to 128 output lanes -> lane-dense epilogue matmul/store.
    w2_pad = jnp.zeros((HIDDEN, LANES), jnp.float32).at[:, :OUTPUT_DIM].set(
        jnp.asarray(w2, jnp.float32))
    b2_pad = jnp.zeros((1, LANES), jnp.float32).at[0, :OUTPUT_DIM].set(
        jnp.asarray(b2, jnp.float32))

    # Lane-dense packing geometry: each graph -> [rows, 128] slab (zero padded).
    rows = _round_up(pl.cdiv(max_nodes, LANES), SUBLANES)
    if rows > ROW_BLOCK_MAX:
        rows = _round_up(rows, ROW_BLOCK_MAX)
        row_block = ROW_BLOCK_MAX
    else:
        row_block = rows
    n_row_blocks = rows // row_block

    def pack_graphs(node_feat_list):
        """List of per-graph [n_g, FEATS_DIM] node features (post-GNN) ->
        (x_packed [B_pad, rows, 128] bf16, inv_counts [B_pad, 128] f32)."""
        b = len(node_feat_list)
        b_padded = _round_up(max(b, 1), SUBLANES)
        x_np = np.zeros((b_padded, rows * LANES), np.float32)
        inv_np = np.zeros((b_padded, LANES), np.float32)   # padding graphs -> 0
        for g, xg in enumerate(node_feat_list):
            flat = np.asarray(xg, np.float32).reshape(-1)  # feats_dim == 1
            n = flat.shape[0]
            assert n <= rows * LANES, "graph larger than max_nodes capacity"
            x_np[g, :n] = flat
            inv_np[g, :] = 1.0 / max(n, 1)                 # guard empty graphs
        x_packed = jnp.asarray(x_np.reshape(b_padded, rows, LANES), dtype=x_dtype)
        inv_counts = jnp.asarray(inv_np)
        return x_packed, inv_counts

    @jax.jit
    def forward_batched(x_packed, inv_counts):
        """x_packed: [B_pad, rows, 128]; inv_counts: [B_pad, 128].
        Returns [B_pad, OUTPUT_DIM]; rows >= the true batch size are padding."""
        b_padded = x_packed.shape[0]
        g = _pick_graph_block(b_padded, row_block)
        n_graph_blocks = b_padded // g
        grid_spec = pltpu.PrefetchScalarGridSpec(
            num_scalar_prefetch=0,
            grid=(n_graph_blocks, n_row_blocks),
            in_specs=[
                pl.BlockSpec((g, row_block, LANES), lambda gb, rb: (gb, rb, 0)),
                pl.BlockSpec((g, LANES), lambda gb, rb: (gb, 0)),
                pl.BlockSpec((1, HIDDEN), lambda gb, rb: (0, 0)),
                pl.BlockSpec((1, HIDDEN), lambda gb, rb: (0, 0)),
                pl.BlockSpec((HIDDEN, LANES), lambda gb, rb: (0, 0)),
                pl.BlockSpec((1, LANES), lambda gb, rb: (0, 0)),
            ],
            out_specs=pl.BlockSpec((g, LANES), lambda gb, rb: (gb, 0)),
            scratch_shapes=[pltpu.VMEM((g, LANES), jnp.float32)],
        )
        out = pl.pallas_call(
            _dipole_head_kernel,
            out_shape=jax.ShapeDtypeStruct((b_padded, LANES), jnp.float32),
            grid_spec=grid_spec,
            compiler_params=pltpu.CompilerParams(
                dimension_semantics=("parallel", "arbitrary")),
        )(x_packed, inv_counts, w1_row, b1_row, w2_pad, b2_pad)
        return out[:, :OUTPUT_DIM]                         # [B_pad, OUTPUT_DIM]

    return pack_graphs, forward_batched


def dipole_prediction_forward(x, pack_graphs, forward_batched):
    """Single-graph forward matching DipolePredictionModel.forward (post-GNN x)."""
    x_packed, inv_counts = pack_graphs([x])
    out = forward_batched(x_packed, inv_counts)[0]         # [OUTPUT_DIM]
    return out[0] if OUTPUT_DIM == 1 else out              # torch .squeeze(-1)


def _reference(x, w1, b1, w2, b2, x_dtype=X_DTYPE):
    xq = jnp.asarray(x, x_dtype).astype(jnp.float32)       # same bf16 input rounding
    xm = jnp.mean(xq, axis=0)                              # [FEATS_DIM]
    h = jnp.maximum(xm @ w1 + b1, 0.0)
    out = h @ w2 + b2
    return out[0] if OUTPUT_DIM == 1 else out


if __name__ == "__main__":
    key = jax.random.PRNGKey(0)
    k_x1, k_x2, k_w1, k_b1, k_w2, k_b2, k_n, k_xm = jax.random.split(key, 8)

    # Parameters with shapes from nn.Linear(1, 128) and nn.Linear(128, 3).
    w1 = jax.random.normal(k_w1, (FEATS_DIM, HIDDEN), jnp.float32) * 0.5
    b1 = jax.random.normal(k_b1, (HIDDEN,), jnp.float32) * 0.1
    w2 = jax.random.normal(k_w2, (HIDDEN, OUTPUT_DIM), jnp.float32) * 0.1
    b2 = jax.random.normal(k_b2, (OUTPUT_DIM,), jnp.float32) * 0.1

    pack_graphs, forward_batched = make_dipole_head(w1, b1, w2, b2, max_nodes=64)

    # Two graphs (post-GNN node embeddings, feats_dim = 1) with different node counts.
    x_a = jax.random.normal(k_x1, (10, FEATS_DIM), jnp.float32)
    x_b = jax.random.normal(k_x2, (37, FEATS_DIM), jnp.float32)

    x_packed, inv_counts = pack_graphs([x_a, x_b])
    out = jax.block_until_ready(forward_batched(x_packed, inv_counts))[:2]   # [2, 3]

    ref = jnp.stack([_reference(x_a, w1, b1, w2, b2),
                     _reference(x_b, w1, b1, w2, b2)])
    assert out.shape == ref.shape, (out.shape, ref.shape)
    assert jnp.allclose(out, ref, atol=1e-4, rtol=1e-4), (out, ref)

    # Larger batch: exercises multiple graph blocks on the "parallel" grid axis.
    n_graphs = 20
    node_counts = jax.random.randint(k_n, (n_graphs,), 1, 65)
    xm_keys = jax.random.split(k_xm, n_graphs)
    graphs = [jax.random.normal(xm_keys[i], (int(node_counts[i]), FEATS_DIM),
                                jnp.float32) for i in range(n_graphs)]
    xp2, inv2 = pack_graphs(graphs)
    out2 = jax.block_until_ready(forward_batched(xp2, inv2))[:n_graphs]
    ref2 = jnp.stack([_reference(g, w1, b1, w2, b2) for g in graphs])
    assert jnp.allclose(out2, ref2, atol=1e-4, rtol=1e-4), (out2, ref2)

    # Single-graph path (== DipolePredictionModel.forward on one graph).
    single = jax.block_until_ready(
        dipole_prediction_forward(x_a, pack_graphs, forward_batched))
    assert jnp.allclose(single, ref[0], atol=1e-4, rtol=1e-4), (single, ref[0])

    print("KERNEL_OK")
</pallas_src>

<mosaic_0001>
module attributes {stable_mosaic.version = 11 : i64} {
  func.func @_dipole_head_kernel(%arg0: i32, %arg1: i32, %arg2: memref<8x8x128xbf16, #tpu.memory_space<vmem>>, %arg3: memref<8x128xf32, #tpu.memory_space<vmem>>, %arg4: memref<1x128xf32, #tpu.memory_space<vmem>>, %arg5: memref<1x128xf32, #tpu.memory_space<vmem>>, %arg6: memref<128x128xf32, #tpu.memory_space<vmem>>, %arg7: memref<1x128xf32, #tpu.memory_space<vmem>>, %arg8: memref<8x128xf32, #tpu.memory_space<vmem>>, %arg9: memref<8x128xf32, #tpu.memory_space<vmem>>) attributes {dimension_semantics = [#tpu.dimension_semantics<parallel>, #tpu.dimension_semantics<arbitrary>], iteration_bounds = array<i64: 1, 1>, scalar_prefetch = 0 : i64, scratch_operands = 1 : i64, tpu.core_type = #tpu.core_type<tc>, window_params = [{transform_indices = @transform_0, window_bounds = array<i64: 8, 8, 128>}, {transform_indices = @transform_1, window_bounds = array<i64: 8, 128>}, {pipeline_mode = #tpu.pipeline_mode<synchronous>, transform_indices = @transform_2, window_bounds = array<i64: 1, 128>}, {pipeline_mode = #tpu.pipeline_mode<synchronous>, transform_indices = @transform_3, window_bounds = array<i64: 1, 128>}, {pipeline_mode = #tpu.pipeline_mode<synchronous>, transform_indices = @transform_4, window_bounds = array<i64: 128, 128>}, {pipeline_mode = #tpu.pipeline_mode<synchronous>, transform_indices = @transform_5, window_bounds = array<i64: 1, 128>}, {transform_indices = @transform_6, window_bounds = array<i64: 8, 128>}]} {
    %c0_i32 = arith.constant 0 : i32
    %0 = arith.cmpi eq, %arg1, %c0_i32 : i32
    %1 = arith.extui %0 : i1 to i32
    %c0_i32_0 = arith.constant 0 : i32
    %2 = arith.cmpi ne, %1, %c0_i32_0 : i32
    scf.if %2 {
      %cst_9 = arith.constant 0.000000e+00 : f32
      %12 = vector.broadcast %cst_9 : f32 to vector<8x128xf32>
      %c0_10 = arith.constant 0 : index
      %c0_11 = arith.constant 0 : index
      %13 = vector.load %arg9[%c0_10, %c0_11] : memref<8x128xf32, #tpu.memory_space<vmem>>, vector<8x128xf32>
      tpu.vector_store %arg9[%c0_10, %c0_11], %12 {strides = array<i32>} : memref<8x128xf32, #tpu.memory_space<vmem>>, vector<8x128xf32>,
    } else {
    }
    %c0 = arith.constant 0 : index
    %c0_1 = arith.constant 0 : index
    %3 = vector.load %arg9[%c0, %c0_1] : memref<8x128xf32, #tpu.memory_space<vmem>>, vector<8x128xf32>
    %c0_2 = arith.constant 0 : index
    %c0_3 = arith.constant 0 : index
    %c0_4 = arith.constant 0 : index
    %4 = vector.load %arg2[%c0_2, %c0_3, %c0_4] : memref<8x8x128xbf16, #tpu.memory_space<vmem>>, vector<8x8x128xbf16>
    %5 = arith.extf %4 : vector<8x8x128xbf16> to vector<8x8x128xf32>
    %cst = arith.constant dense<0.000000e+00> : vector<8x128xf32>
    %6 = vector.multi_reduction <add>, %5, %cst [1] : vector<8x8x128xf32> to vector<8x128xf32>
    %7 = arith.addf %3, %6 : vector<8x128xf32>
    %c0_5 = arith.constant 0 : index
    %c0_6 = arith.constant 0 : index
    %8 = vector.load %arg9[%c0_5, %c0_6] : memref<8x128xf32, #tpu.memory_space<vmem>>, vector<8x128xf32>
    tpu.vector_store %arg9[%c0_5, %c0_6], %7 {strides = array<i32>} : memref<8x128xf32, #tpu.memory_space<vmem>>, vector<8x128xf32>,
    %c0_i32_7 = arith.constant 0 : i32
    %9 = arith.cmpi eq, %arg1, %c0_i32_7 : i32
    %10 = arith.extui %9 : i1 to i32
    %c0_i32_8 = arith.constant 0 : i32
    %11 = arith.cmpi ne, %10, %c0_i32_8 : i32
    scf.if %11 {
      %c0_9 = arith.constant 0 : index
      %c0_10 = arith.constant 0 : index
      %12 = vector.load %arg9[%c0_9, %c0_10] : memref<8x128xf32, #tpu.memory_space<vmem>>, vector<8x128xf32>
      %c0_11 = arith.constant 0 : index
      %c0_12 = arith.constant 0 : index
      %13 = vector.load %arg3[%c0_11, %c0_12] : memref<8x128xf32, #tpu.memory_space<vmem>>, vector<8x128xf32>
      %14 = arith.mulf %12, %13 : vector<8x128xf32>
      %cst_13 = arith.constant dense<0.000000e+00> : vector<8xf32>
      %15 = vector.multi_reduction <add>, %14, %cst_13 [1] : vector<8x128xf32> to vector<8xf32>
      %16 = vector.shape_cast %15 : vector<8xf32> to vector<8x1xf32>
      %c0_14 = arith.constant 0 : index
      %c0_15 = arith.constant 0 : index
      %17 = vector.load %arg4[%c0_14, %c0_15] : memref<1x128xf32, #tpu.memory_space<vmem>>, vector<1x128xf32>
      %18 = vector.broadcast %16 : vector<8x1xf32> to vector<8x128xf32>
      %19 = vector.broadcast %17 : vector<1x128xf32> to vector<8x128xf32>
      %20 = arith.mulf %18, %19 : vector<8x128xf32>
      %c0_16 = arith.constant 0 : index
      %c0_17 = arith.constant 0 : index
      %21 = vector.load %arg5[%c0_16, %c0_17] : memref<1x128xf32, #tpu.memory_space<vmem>>, vector<1x128xf32>
      %22 = vector.broadcast %21 : vector<1x128xf32> to vector<8x128xf32>
      %23 = arith.addf %20, %22 : vector<8x128xf32>
      %cst_18 = arith.constant 0.000000e+00 : f32
      %24 = vector.broadcast %cst_18 : f32 to vector<8x128xf32>
      %25 = arith.maximumf %23, %24 : vector<8x128xf32>
      %c0_19 = arith.constant 0 : index
      %c0_20 = arith.constant 0 : index
      %26 = vector.load %arg6[%c0_19, %c0_20] : memref<128x128xf32, #tpu.memory_space<vmem>>, vector<128x128xf32>
      %cst_21 = arith.constant dense<0.000000e+00> : vector<8x128xf32>
      %27 = tpu.matmul %25, %26, %cst_21 {dimension_numbers = #tpu.dot_dimension_numbers<[1], [0], [0], [1], [0, 0, 1, 1], [], []>} : vector<8x128xf32>, vector<128x128xf32>, vector<8x128xf32> -> vector<8x128xf32>
      %c0_22 = arith.constant 0 : index
      %c0_23 = arith.constant 0 : index
      %28 = vector.load %arg7[%c0_22, %c0_23] : memref<1x128xf32, #tpu.memory_space<vmem>>, vector<1x128xf32>
      %29 = vector.broadcast %28 : vector<1x128xf32> to vector<8x128xf32>
      %30 = arith.addf %27, %29 : vector<8x128xf32>
      %c0_24 = arith.constant 0 : index
      %c0_25 = arith.constant 0 : index
      %31 = vector.load %arg8[%c0_24, %c0_25] : memref<8x128xf32, #tpu.memory_space<vmem>>, vector<8x128xf32>
      tpu.vector_store %arg8[%c0_24, %c0_25], %30 {strides = array<i32>} : memref<8x128xf32, #tpu.memory_space<vmem>>, vector<8x128xf32>,
    } else {
    }
    return
  }
  func.func @transform_0(%arg0: i32, %arg1: i32) -> (i32, i32, i32) {
    %c0_i32 = arith.constant 0 : i32
    %c0_i32_0 = arith.constant 0 : i32
    return %arg0, %arg1, %c0_i32 : i32, i32, i32
  }
  func.func @transform_1(%arg0: i32, %arg1: i32) -> (i32, i32) {
    %c0_i32 = arith.constant 0 : i32
    %c0_i32_0 = arith.constant 0 : i32
    return %arg0, %c0_i32 : i32, i32
  }
  func.func @transform_2(%arg0: i32, %arg1: i32) -> (i32, i32) {
    %c0_i32 = arith.constant 0 : i32
    %c0_i32_0 = arith.constant 0 : i32
    %c0_i32_1 = arith.constant 0 : i32
    return %c0_i32, %c0_i32_0 : i32, i32
  }
  func.func @transform_3(%arg0: i32, %arg1: i32) -> (i32, i32) {
    %c0_i32 = arith.constant 0 : i32
    %c0_i32_0 = arith.constant 0 : i32
    %c0_i32_1 = arith.constant 0 : i32
    return %c0_i32, %c0_i32_0 : i32, i32
  }
  func.func @transform_4(%arg0: i32, %arg1: i32) -> (i32, i32) {
    %c0_i32 = arith.constant 0 : i32
    %c0_i32_0 = arith.constant 0 : i32
    %c0_i32_1 = arith.constant 0 : i32
    return %c0_i32, %c0_i32_0 : i32, i32
  }
  func.func @transform_5(%arg0: i32, %arg1: i32) -> (i32, i32) {
    %c0_i32 = arith.constant 0 : i32
    %c0_i32_0 = arith.constant 0 : i32
    %c0_i32_1 = arith.constant 0 : i32
    return %c0_i32, %c0_i32_0 : i32, i32
  }
  func.func @transform_6(%arg0: i32, %arg1: i32) -> (i32, i32) {
    %c0_i32 = arith.constant 0 : i32
    %c0_i32_0 = arith.constant 0 : i32
    return %arg0, %c0_i32 : i32, i32
  }
}

</mosaic_0001>

<llo_original>
// kernel: forward_batched.1
$region0: #{forward_batched.1}
  #allocation0 [shape = 'u32[]', space=smem, size = 0x4, offset = 0x4, fixed_abs, tag = 'smem constant byte address 0x4 - core index']
  #allocation1 [shape = 'u32[144,128]{1,0:T(1,128)}', space=vmem, size = 0x12000, scoped, tag = 'internal scratch']
  #allocation2 [shape = 'f32[8,128]{1,0:T(8,128)}', space=vmem, size = 0x1000, scoped, tag = 'scratch operand']
  %s0 = inlined_call_operand.hbm [shape: bf16[8,8,128], index: 0, kind: input, shape index: {}]
  %s1 = inlined_call_operand.hbm [shape: f32[8,128], index: 1, kind: input, shape index: {}]
  %s2 = inlined_call_operand.vmem [shape: f32[1,128], index: 2, kind: input, shape index: {}]
  %s3 = inlined_call_operand.vmem [shape: f32[1,128], index: 3, kind: input, shape index: {}]
  %s4 = inlined_call_operand.hbm [shape: f32[128,128], index: 4, kind: input, shape index: {}]
  %s5 = inlined_call_operand.vmem [shape: f32[1,128], index: 5, kind: input, shape index: {}]
  %s6 = inlined_call_operand.vmem [shape: f32[8,128], index: 6, kind: output, shape index: {}]
  %s7 = sld [smem:[#allocation0]]
  $region54: #{forward_batched.1} parent=0
    _
  %s9 = ssub.s32 1, %s7
  %s10 = scalar_select 0, %s9, %s7
  $region1: #{forward_batched.1} parent=0
    #allocation3 [shape = 'u8[16384]{0}', space=vmem, size = 0x4000, scoped, tag = 'input window, operand 0, single buffered']
    #allocation4 [shape = 's32[1]{0}', space=sflag, size = 0x4, scoped, tag = 'scoped memory for forward_batched.1']
    #allocation5 [shape = 'u8[4096]{0}', space=vmem, size = 0x1000, scoped, tag = 'input window, operand 1, single buffered']
    #allocation6 [shape = 's32[1]{0}', space=sflag, size = 0x4, scoped, tag = 'scoped memory for forward_batched.1']
    #allocation7 [shape = 'u8[65536]{0}', space=vmem, size = 0x10000, scoped, tag = 'input window, operand 4, single buffered']
    %11 = vsyncpa [#allocation4], 0
    %12 = vsyncpa [#allocation6], 0
    // Predicated region
    $region2: #{forward_batched.1} parent=1 // pred_check
      _
    $region3: #{forward_batched.1} parent=1 // pred_check_branch
      %14 = sbr.rel (0) target = $region5
    $region4: #{forward_batched.1} parent=1 // pred_region
      %s16 = ssub.s32 512, 512
      %17 = vsyncadd [#allocation4], %s16
      %s18 = sshll.u32 [#allocation3], 4
      %s19 = int_to_ptr.vmem [resolvable:$true] %s18
      %24 = dma.hbm_to_vmem [thread:$0]  %s0, 512, %s19, [#allocation4], 64, 64, 4
    $region5: #{forward_batched.1} parent=1 // pred_fallthru
      _
    // Predicated region
    $region6: #{forward_batched.1} parent=1 // pred_check
      _
    $region7: #{forward_batched.1} parent=1 // pred_check_branch
      %26 = sbr.rel (0) target = $region9
    $region8: #{forward_batched.1} parent=1 // pred_region
      %s28 = ssub.s32 128, 128
      %29 = vsyncadd [#allocation6], %s28
      %s31 = sshll.u32 [#allocation5], 4
      %s32 = int_to_ptr.vmem [resolvable:$true] %s31
      %34 = dma.hbm_to_vmem [thread:$0]  %s1, 128, %s32, [#allocation6]
    $region9: #{forward_batched.1} parent=1 // pred_fallthru
      _
    // Predicated region
    $region10: #{forward_batched.1} parent=1 // pred_check
      _
    $region11: #{forward_batched.1} parent=1 // pred_check_branch
      %36 = sbr.rel (0) target = $region13
    $region12: #{forward_batched.1} parent=1 // pred_region
      _
    $region13: #{forward_batched.1} parent=1 // pred_fallthru
      _
    // Predicated region
    $region14: #{forward_batched.1} parent=1 // pred_check
      _
    $region15: #{forward_batched.1} parent=1 // pred_check_branch
      %38 = sbr.rel (0) target = $region17
    $region16: #{forward_batched.1} parent=1 // pred_region
      _
    $region17: #{forward_batched.1} parent=1 // pred_fallthru
      _
    // Predicated region
    $region18: #{forward_batched.1} parent=1 // pred_check
      _
    $region19: #{forward_batched.1} parent=1 // pred_check_branch
      %40 = sbr.rel (0) target = $region21
    $region20: #{forward_batched.1} parent=1 // pred_region
      %s42 = ssub.s32 2048, 2048
      %43 = vsyncadd [#allocation6], %s42
      %s44 = sshll.u32 [#allocation7], 4
      %s45 = int_to_ptr.vmem [resolvable:$true] %s44
      %50 = dma.hbm_to_vmem [thread:$0]  %s4, 2048, %s45, [#allocation6], 128, 128, 8
    $region21: #{forward_batched.1} parent=1 // pred_fallthru
      _
    // Predicated region
    $region22: #{forward_batched.1} parent=1 // pred_check
      _
    $region23: #{forward_batched.1} parent=1 // pred_check_branch
      %52 = sbr.rel (0) target = $region25
    $region24: #{forward_batched.1} parent=1 // pred_region
      _
    $region25: #{forward_batched.1} parent=1 // pred_fallthru
      _
    // Predicated region
    $region26: #{forward_batched.1} parent=1 // pred_check
      _
    $region27: #{forward_batched.1} parent=1 // pred_check_branch
      %54 = sbr.rel (0) target = $region29
    $region28: #{forward_batched.1} parent=1 // pred_region
      %55 = dma.done [#allocation4], 512
    $region29: #{forward_batched.1} parent=1 // pred_fallthru
      _
    // Predicated region
    $region30: #{forward_batched.1} parent=1 // pred_check
      _
    $region31: #{forward_batched.1} parent=1 // pred_check_branch
      %57 = sbr.rel (0) target = $region33
    $region32: #{forward_batched.1} parent=1 // pred_region
      %58 = dma.done [#allocation6], 128
    $region33: #{forward_batched.1} parent=1 // pred_fallthru
      _
    // Predicated region
    $region34: #{forward_batched.1} parent=1 // pred_check
      _
    $region35: #{forward_batched.1} parent=1 // pred_check_branch
      %60 = sbr.rel (0) target = $region37
    $region36: #{forward_batched.1} parent=1 // pred_region
      %61 = dma.done [#allocation6], 2048
    $region37: #{forward_batched.1} parent=1 // pred_fallthru
      _
    %p62 = scmp.eq.s32.totalorder 0, 0
    // Predicated region
    $region38: #{forward_batched.1} parent=1 // pred_check
      %p63 = pneg %p62
    $region39: #{forward_batched.1} parent=1 // pred_check_branch
      %65 = sbr.rel (%p63) target = $region41
    $region40: #{forward_batched.1} parent=1 // pred_region
      %66 = vst [vmem:[#allocation2] sm:$0xff] 0.0
    $region41: #{forward_batched.1} parent=1 // pred_fallthru
      _
    %v67 = vld [vmem:[#allocation2] sm:$0xff]
    %v68 = vld [vmem:[#allocation3] sm:$0xf]
    %v69 = vld [vmem:[#allocation3 + $0x4] sm:$0xf]
    %v70 = vld [vmem:[#allocation3 + $0x8] sm:$0xf]
    %v71 = vld [vmem:[#allocation3 + $0xc] sm:$0xf]
    %v72 = vld [vmem:[#allocation3 + $0x10] sm:$0xf]
    %v73 = vld [vmem:[#allocation3 + $0x14] sm:$0xf]
    %v74 = vld [vmem:[#allocation3 + $0x18] sm:$0xf]
    %v75 = vld [vmem:[#allocation3 + $0x1c] sm:$0xf]
    %v76 = vunpack.c.l.bf16 %v68
    %v77 = vunpack.c.l.bf16 %v69
    %v78 = vunpack.c.l.bf16 %v70
    %v79 = vunpack.c.l.bf16 %v71
    %v80 = vunpack.c.l.bf16 %v72
    %v81 = vunpack.c.l.bf16 %v73
    %v82 = vunpack.c.l.bf16 %v74
    %v83 = vunpack.c.l.bf16 %v75
    %v84 = vrot.slane %v76, 4
    %v85 = vadd.f32 %v76, %v84
    %v86 = vrot.slane %v85, 2
    %v87 = vadd.f32 %v85, %v86
    %v88 = vrot.slane %v87, 1
    %v89 = vadd.f32 %v87, %v88
    %v90 = vrot.slane %v77, 4
    %v91 = vadd.f32 %v77, %v90
    %v92 = vrot.slane %v91, 2
    %v93 = vadd.f32 %v91, %v92
    %v94 = vrot.slane %v93, 1
    %v95 = vadd.f32 %v93, %v94
    %v96 = vrot.slane %v78, 4
    %v97 = vadd.f32 %v78, %v96
    %v98 = vrot.slane %v97, 2
    %v99 = vadd.f32 %v97, %v98
    %v100 = vrot.slane %v99, 1
    %v101 = vadd.f32 %v99, %v100
    %v102 = vrot.slane %v79, 4
    %v103 = vadd.f32 %v79, %v102
    %v104 = vrot.slane %v103, 2
    %v105 = vadd.f32 %v103, %v104
    %v106 = vrot.slane %v105, 1
    %v107 = vadd.f32 %v105, %v106
    %v108 = vrot.slane %v80, 4
    %v109 = vadd.f32 %v80, %v108
    %v110 = vrot.slane %v109, 2
    %v111 = vadd.f32 %v109, %v110
    %v112 = vrot.slane %v111, 1
    %v113 = vadd.f32 %v111, %v112
    %v114 = vrot.slane %v81, 4
    %v115 = vadd.f32 %v81, %v114
    %v116 = vrot.slane %v115, 2
    %v117 = vadd.f32 %v115, %v116
    %v118 = vrot.slane %v117, 1
    %v119 = vadd.f32 %v117, %v118
    %v120 = vrot.slane %v82, 4
    %v121 = vadd.f32 %v82, %v120
    %v122 = vrot.slane %v121, 2
    %v123 = vadd.f32 %v121, %v122
    %v124 = vrot.slane %v123, 1
    %v125 = vadd.f32 %v123, %v124
    %v126 = vrot.slane %v83, 4
    %v127 = vadd.f32 %v83, %v126
    %v128 = vrot.slane %v127, 2
    %v129 = vadd.f32 %v127, %v128
    %v130 = vrot.slane %v129, 1
    %v131 = vadd.f32 %v129, %v130
    %vm140 = vcmask 1041409
    %v141 = vsel %vm140, %v95, %v89
    %vm142 = vcmask 1042434
    %v143 = vsel %vm142, %v101, %v141
    %vm144 = vcmask 1043459
    %v145 = vsel %vm144, %v107, %v143
    %vm146 = vcmask 1044484
    %v147 = vsel %vm146, %v113, %v145
    %vm148 = vcmask 1045509
    %v149 = vsel %vm148, %v119, %v147
    %vm150 = vcmask 1046534
    %v151 = vsel %vm150, %v125, %v149
    %vm152 = vcmask 1047559
    %v153 = vsel %vm152, %v131, %v151
    %v155 = vadd.f32 %v67, %v153
    %156 = vst [vmem:[#allocation2] sm:$0xff] %v155
    // Predicated region
    $region42: #{forward_batched.1} parent=1 // pred_check
      %p157 = pneg %p62
    $region43: #{forward_batched.1} parent=1 // pred_check_branch
      %159 = sbr.rel (%p157) target = $region45
    $region44: #{forward_batched.1} parent=1 // pred_region
      %v160 = vld [vmem:[#allocation2] sm:$0xff]
      %v161 = vld [vmem:[#allocation5] sm:$0xff]
      %v162 = vmul.f32 %v160, %v161
      %163 = vadd.xlane.f32.xlu0 %v162
      %v164 = vpop.xlane.xlu0 %163
      %v165 = vld [vmem:[%s2] sm:$0x1]
      %v167 = vlaneseq
      %v168 = vshrl.u32 %v167, 7
      %v169 = vsub.s32 0, %v168
      %v170 = vrot.slane %v165, %v169
      %v172 = vmul.f32 %v164, %v170
      %v173 = vld [vmem:[%s3] sm:$0x1]
      %v175 = vlaneseq
      %v176 = vshrl.u32 %v175, 7
      %v177 = vsub.s32 0, %v176
      %v178 = vrot.slane %v173, %v177
      %v180 = vadd.f32 %v172, %v178
      %v181 = vmax.f32 %v180, 0.0
      %v182 = vld [vmem:[#allocation7] sm:$0xff]
      %v183 = vld [vmem:[#allocation7 + $0x8] sm:$0xff]
      %v184 = vld [vmem:[#allocation7 + $0x10] sm:$0xff]
      %v185 = vld [vmem:[#allocation7 + $0x18] sm:$0xff]
      %v186 = vld [vmem:[#allocation7 + $0x20] sm:$0xff]
      %v187 = vld [vmem:[#allocation7 + $0x28] sm:$0xff]
      %v188 = vld [vmem:[#allocation7 + $0x30] sm:$0xff]
      %v189 = vld [vmem:[#allocation7 + $0x38] sm:$0xff]
      %v190 = vld [vmem:[#allocation7 + $0x40] sm:$0xff]
      %v191 = vld [vmem:[#allocation7 + $0x48] sm:$0xff]
      %v192 = vld [vmem:[#allocation7 + $0x50] sm:$0xff]
      %v193 = vld [vmem:[#allocation7 + $0x58] sm:$0xff]
      %v194 = vld [vmem:[#allocation7 + $0x60] sm:$0xff]
      %v195 = vld [vmem:[#allocation7 + $0x68] sm:$0xff]
      %v196 = vld [vmem:[#allocation7 + $0x70] sm:$0xff]
      %v197 = vld [vmem:[#allocation7 + $0x78] sm:$0xff]
      %v198 = vld [vmem:[%s5] sm:$0x1]
      %v200 = vlaneseq
      %v201 = vshrl.u32 %v200, 7
      %v202 = vsub.s32 0, %v201
      %v203 = vrot.slane %v198, %v202
      %205 = vmatprep.subr.mxu0 0.0
      %206 = vmatpush1.msra.mxu0 %v182
      %207 = vmatprep.subr.mxu0 0.0
      %208 = vmatpush1.msra.mxu0 %v183
      %209 = vmatprep.subr.mxu0 0.0
      %210 = vmatpush1.msra.mxu0 %v184
      %211 = vmatprep.subr.mxu0 0.0
      %212 = vmatpush1.msra.mxu0 %v185
      %213 = vmatprep.subr.mxu0 0.0
      %214 = vmatpush1.msra.mxu0 %v186
      %215 = vmatprep.subr.mxu0 0.0
      %216 = vmatpush1.msra.mxu0 %v187
      %217 = vmatprep.subr.mxu0 0.0
      %218 = vmatpush1.msra.mxu0 %v188
      %219 = vmatprep.subr.mxu0 0.0
      %220 = vmatpush1.msra.mxu0 %v189
      %221 = vmatprep.subr.mxu0 0.0
      %222 = vmatpush1.msra.mxu0 %v190
      %223 = vmatprep.subr.mxu0 0.0
      %224 = vmatpush1.msra.mxu0 %v191
      %225 = vmatprep.subr.mxu0 0.0
      %226 = vmatpush1.msra.mxu0 %v192
      %227 = vmatprep.subr.mxu0 0.0
      %228 = vmatpush1.msra.mxu0 %v193
      %229 = vmatprep.subr.mxu0 0.0
      %230 = vmatpush1.msra.mxu0 %v194
      %231 = vmatprep.subr.mxu0 0.0
      %232 = vmatpush1.msra.mxu0 %v195
      %233 = vmatprep.subr.mxu0 0.0
      %234 = vmatpush1.msra.mxu0 %v196
      %235 = vmatprep.subr.mxu0 0.0
      %236 = vmatpush1.msra.mxu0 %v197
      %237 = vmatprep.subr.mxu0 0.0
      %238 = vmatpush1.msra.mxu0 0.0
      %239 = vmatprep.subr.mxu0 0.0
      %240 = vmatpush1.msra.mxu0 0.0
      %241 = vmatprep.subr.mxu0 0.0
      %242 = vmatpush1.msra.mxu0 0.0
      %243 = vmatprep.subr.mxu0 0.0
      %244 = vmatpush1.msra.mxu0 0.0
      %245 = vmatprep.subr.mxu0 0.0
      %246 = vmatpush1.msra.mxu0 0.0
      %247 = vmatprep.subr.mxu0 0.0
      %248 = vmatpush1.msra.mxu0 0.0
      %249 = vmatprep.subr.mxu0 0.0
      %250 = vmatpush1.msra.mxu0 0.0
      %251 = vmatprep.subr.mxu0 0.0
      %252 = vmatpush1.msra.mxu0 0.0
      %253 = vmatprep.subr.mxu0 0.0
      %254 = vmatpush1.msra.mxu0 0.0
      %255 = vmatprep.subr.mxu0 0.0
      %256 = vmatpush1.msra.mxu0 0.0
      %257 = vmatprep.subr.mxu0 0.0
      %258 = vmatpush1.msra.mxu0 0.0
      %259 = vmatprep.subr.mxu0 0.0
      %260 = vmatpush1.msra.mxu0 0.0
      %261 = vmatprep.subr.mxu0 0.0
      %262 = vmatpush1.msra.mxu0 0.0
      %263 = vmatprep.subr.mxu0 0.0
      %264 = vmatpush1.msra.mxu0 0.0
      %265 = vmatprep.subr.mxu0 0.0
      %266 = vmatpush1.msra.mxu0 0.0
      %267 = vmatprep.subr.mxu0 0.0
      %268 = vmatpush1.msra.mxu0 0.0
      %269 = vmatprep.mubr.f32.mxu0 0.0
      %270 = vmatmul.mubr.f32.gmra.mrb[0].mxu0 %v181
      %v271 = vpop.f32.mrb[0].mxu0
      %v272 = vadd.f32 %v203, %v271
      %v273 = vpop.f32.mrb[0].mxu0
      %274 = vdwg.mxu0
      %275 = vst [vmem:[%s6] sm:$0xff] %v272
    $region45: #{forward_batched.1} parent=1 // pred_fallthru
      _
    // Predicated region
    $region46: #{forward_batched.1} parent=1 // pred_check
      _
    $region47: #{forward_batched.1} parent=1 // pred_check_branch
      %277 = sbr.rel (0) target = $region49
    $region48: #{forward_batched.1} parent=1 // pred_region
      _
    $region49: #{forward_batched.1} parent=1 // pred_fallthru
      _
    // Predicated region
    $region50: #{forward_batched.1} parent=1 // pred_check
      _
    $region51: #{forward_batched.1} parent=1 // pred_check_branch
      %279 = sbr.rel (0) target = $region53
    $region52: #{forward_batched.1} parent=1 // pred_region
      _
    $region53: #{forward_batched.1} parent=1 // pred_fallthru
      _
    %280 = vsyncpa [#allocation4], 1
    %281 = vsyncpa [#allocation6], 1

</llo_original>
